<compile_context>
chip_gen: v6e
topology: v6e:2x2x1
jax: 0.10.0
libtpu: 0.0.40
codegen_flags: <defaults>
</compile_context>

<pallas_src>
import jax
import jax.numpy as jnp
from jax.experimental import pallas as pl
from jax.experimental.pallas import tpu as pltpu

BN_EPS = 1e-5
# v7x has 2 TensorCores per chip; emitting >= 2 "parallel" grid steps keeps both busy.
MIN_GRID_STEPS = 2


def _round_up(n, m):
    return ((n + m - 1) // m) * m


# ----------------------------------------------------------------------------
# Kernel: folded MLP hot path (L matmuls + L-1 ReLUs) on one batch tile.
#   refs = (x_ref, w1, b1, ..., wL, bL, o_ref)
# BatchNorm (eval) is already folded into the following Linear; Dropout = identity.
# ----------------------------------------------------------------------------
def _mlp_kernel(*refs):
    x_ref, o_ref = refs[0], refs[-1]
    wb = refs[1:-1]
    n_layers = len(wb) // 2
    h = x_ref[...]
    for i in range(n_layers):
        w_ref, b_ref = wb[2 * i], wb[2 * i + 1]
        # bf16 operands, f32 MXU accumulation; bias add / ReLU stay f32 on the VPU.
        h = jnp.dot(h.astype(w_ref.dtype), w_ref[...],
                    preferred_element_type=jnp.float32) + b_ref[...]
        if i < n_layers - 1:
            h = jnp.maximum(h, 0.0)
    o_ref[...] = h.astype(o_ref.dtype)


# ----------------------------------------------------------------------------
# One-time parameter plumbing (offline / outside the per-call forward)
# ----------------------------------------------------------------------------
def fold_bn_params(params, num_hidden=3):
    """Fold eval-mode BatchNorm1d (y = a*z + c, a = gamma*rsqrt(var+eps),
    c = beta - mean*a) into the *following* Linear.  Returns [(W, b)] per layer,
    W stored as [in, out]."""
    folded = []
    idx = 0
    W, b = params[idx], params[idx + 1]
    idx += 2
    for _ in range(num_hidden):
        g, be, m, v = params[idx:idx + 4]
        idx += 4
        a = g * jax.lax.rsqrt(v + BN_EPS)       # (1, H)
        c = be - m * a                          # (1, H)
        folded.append((W, b))
        W_next, b_next = params[idx], params[idx + 1]
        idx += 2
        W = a.reshape(-1, 1) * W_next           # diag(a) @ W_next
        b = b_next + c @ W_next
    folded.append((W, b))
    return folded


def prepare_params(params, *, num_hidden=3, use_bf16=True):
    """Call ONCE per set of weights: fold BN and cast matmul operands to bf16
    (biases stay f32).  Returns (weights, biases) tuples reused across forwards."""
    folded = fold_bn_params(params, num_hidden=num_hidden)
    mat_dtype = jnp.bfloat16 if use_bf16 else jnp.float32
    weights = tuple(w.astype(mat_dtype) for w, _ in folded)
    biases = tuple(b.astype(jnp.float32) for _, b in folded)
    return weights, biases


# ----------------------------------------------------------------------------
# Forward
# ----------------------------------------------------------------------------
def keypoint_mlp_forward(x, prepared, *, tile_b=1024):
    """x: [B, input_dim] float32; prepared: output of prepare_params()."""
    weights, biases = prepared
    B, in_dim = x.shape
    num_classes = int(weights[-1].shape[1])

    # Batch tiling: big tiles amortize the ~0.35 us per-grid-step pipeline cost, but
    # keep at least MIN_GRID_STEPS steps so v7x's two TensorCores both get work.
    b_rounded = _round_up(max(B, 1), 8)
    tile_cap = _round_up(tile_b, 8)
    tile_split = _round_up(pl.cdiv(b_rounded, MIN_GRID_STEPS), 8)
    tile_b_eff = max(8, min(tile_cap, tile_split, b_rounded))
    b_padded = _round_up(B, tile_b_eff)
    grid = (b_padded // tile_b_eff,)

    # Only pad the batch dim, and only if needed; no K-pad / dtype cast pass over x.
    xp = x if b_padded == B else jnp.pad(x, ((0, b_padded - B), (0, 0)))

    def batch_map(i):
        return (i, 0)

    def const_map(i):
        return (0, 0)

    in_specs = [pl.BlockSpec((tile_b_eff, in_dim), batch_map)]
    args = [xp]
    for w, b in zip(weights, biases):
        # Full-array blocks with a constant index map -> VMEM-resident, fetched once.
        in_specs.append(pl.BlockSpec(tuple(int(d) for d in w.shape), const_map))
        in_specs.append(pl.BlockSpec(tuple(int(d) for d in b.shape), const_map))
        args.append(w)
        args.append(b)

    # Narrow output (last dim == full array dim): 16 B/row of HBM writeback instead of
    # a 128-lane padded f32 slab, and no lane-slice copy afterwards.
    out_spec = pl.BlockSpec((tile_b_eff, num_classes), batch_map)
    out_shape = jax.ShapeDtypeStruct((b_padded, num_classes), jnp.float32)

    # Scoped-VMEM budget: double-buffered x/out tiles + resident params + f32 hiddens.
    param_bytes = sum(int(a.size) * a.dtype.itemsize for a in args[1:])
    x_tile_bytes = tile_b_eff * in_dim * 4
    out_tile_bytes = tile_b_eff * num_classes * 4
    h_bytes = sum(tile_b_eff * int(w.shape[1]) * 4 for w in weights[:-1])
    vmem_est = 2 * (x_tile_bytes + out_tile_bytes + param_bytes) + h_bytes
    vmem_limit = int(min(max(2 * vmem_est, 32 << 20), 48 << 20))

    # Advisory cost estimate with true (un-padded) layer dims.
    flops = 2 * b_padded * sum(int(w.shape[0]) * int(w.shape[1]) for w in weights)
    bytes_accessed = (b_padded * in_dim * 4 + param_bytes
                      + b_padded * num_classes * 4)

    fn = pl.pallas_call(
        _mlp_kernel,
        out_shape=out_shape,
        grid_spec=pltpu.PrefetchScalarGridSpec(
            num_scalar_prefetch=0,
            grid=grid,
            in_specs=in_specs,
            out_specs=out_spec,
        ),
        compiler_params=pltpu.CompilerParams(
            dimension_semantics=("parallel",),
            vmem_limit_bytes=vmem_limit),
        cost_estimate=pl.CostEstimate(
            flops=flops, transcendentals=0, bytes_accessed=bytes_accessed),
    )
    out = fn(*args)
    return out if b_padded == B else out[:B]


# ----------------------------------------------------------------------------
# Synthetic params + plain-JAX references
# ----------------------------------------------------------------------------
def init_params(key, input_dim=36, hidden_dims=(512, 256, 128), num_classes=4):
    """Deterministic synthetic parameters matching KeypointMLP.__init__ shapes."""
    params = []
    prev = input_dim
    dims = list(hidden_dims) + [num_classes]
    for li, out_dim in enumerate(dims):
        key, kw, kb = jax.random.split(key, 3)
        scale = 1.0 / jnp.sqrt(jnp.float32(prev))
        # stored as [in, out] == W.T of the PyTorch [out, in] layout
        W = jax.random.uniform(kw, (prev, out_dim), jnp.float32, -scale, scale)
        b = jax.random.uniform(kb, (1, out_dim), jnp.float32, -scale, scale)
        params.extend([W, b])
        if li < len(hidden_dims):
            key, kg, kbe, km, kv = jax.random.split(key, 5)
            gamma = 1.0 + 0.1 * jax.random.normal(kg, (1, out_dim), jnp.float32)
            beta = 0.1 * jax.random.normal(kbe, (1, out_dim), jnp.float32)
            run_mean = 0.1 * jax.random.normal(km, (1, out_dim), jnp.float32)
            run_var = jnp.abs(1.0 + 0.1 * jax.random.normal(kv, (1, out_dim), jnp.float32))
            params.extend([gamma, beta, run_mean, run_var])
        prev = out_dim
    return params


def reference_forward(x, params, num_hidden=3):
    """Pure-f32 reference with explicit eval-mode BN (PyTorch semantics)."""
    idx = 0
    h = x
    for _ in range(num_hidden):
        W, b, g, be, m, v = params[idx:idx + 6]
        idx += 6
        h = jnp.maximum(
            jnp.dot(h, W, precision=jax.lax.Precision.HIGHEST) + b, 0.0)
        h = (h - m) * jax.lax.rsqrt(v + BN_EPS) * g + be
    W, b = params[idx:idx + 2]
    return jnp.dot(h, W, precision=jax.lax.Precision.HIGHEST) + b


def folded_reference(x, params, num_hidden=3, mat_dtype=jnp.float32):
    """Plain-JAX version of the exact folded / cast computation the kernel does."""
    folded = fold_bn_params(params, num_hidden=num_hidden)
    h = x.astype(mat_dtype)
    for W, b in folded[:-1]:
        h = jnp.maximum(
            jnp.dot(h, W.astype(mat_dtype),
                    preferred_element_type=jnp.float32,
                    precision=jax.lax.Precision.HIGHEST) + b.astype(jnp.float32),
            0.0).astype(mat_dtype)
    W, b = folded[-1]
    return jnp.dot(h, W.astype(mat_dtype),
                   preferred_element_type=jnp.float32,
                   precision=jax.lax.Precision.HIGHEST) + b.astype(jnp.float32)


if __name__ == "__main__":
    key = jax.random.PRNGKey(0)
    key, kx = jax.random.split(key)
    B, input_dim = 64, 36
    hidden_dims = (512, 256, 128)
    num_classes = 4

    x = jax.random.normal(kx, (B, input_dim), jnp.float32)
    params = init_params(key, input_dim=input_dim,
                         hidden_dims=hidden_dims, num_classes=num_classes)

    # One-time parameter prep (BN fold + bf16 cast), reused across forward calls.
    prepared = prepare_params(params, num_hidden=len(hidden_dims))

    fwd = jax.jit(keypoint_mlp_forward)
    out = jax.block_until_ready(fwd(x, prepared))
    assert out.shape == (B, num_classes), out.shape

    # 1) BN-fold math check, entirely in f32 (no bf16 involved).
    ref_f32 = reference_forward(x, params)
    fold_f32 = folded_reference(x, params, mat_dtype=jnp.float32)
    assert jnp.allclose(fold_f32, ref_f32, atol=1e-4, rtol=1e-4), \
        f"fold max abs err {jnp.max(jnp.abs(fold_f32 - ref_f32))}"

    # 2) Kernel vs matched (folded, bf16-operand, f32-accumulate) reference.
    ref_bf16 = folded_reference(x, params, mat_dtype=jnp.bfloat16)
    assert jnp.allclose(out, ref_bf16, atol=1e-2, rtol=1e-2), \
        f"kernel max abs err {jnp.max(jnp.abs(out - ref_bf16))}"

    # TODO(synk): train-mode Dropout / BatchNorm batch-statistics are not implemented
    # (inference semantics only, matching module.eval()).
    print("KERNEL_OK")
</pallas_src>

<mosaic_0001>
module attributes {stable_mosaic.version = 11 : i64} {
  func.func @_mlp_kernel(%arg0: i32, %arg1: memref<32x36xf32, #tpu.memory_space<vmem>>, %arg2: memref<36x512xbf16, #tpu.memory_space<vmem>>, %arg3: memref<1x512xf32, #tpu.memory_space<vmem>>, %arg4: memref<512x256xbf16, #tpu.memory_space<vmem>>, %arg5: memref<1x256xf32, #tpu.memory_space<vmem>>, %arg6: memref<256x128xbf16, #tpu.memory_space<vmem>>, %arg7: memref<1x128xf32, #tpu.memory_space<vmem>>, %arg8: memref<128x4xbf16, #tpu.memory_space<vmem>>, %arg9: memref<1x4xf32, #tpu.memory_space<vmem>>, %arg10: memref<32x4xf32, #tpu.memory_space<vmem>>) attributes {dimension_semantics = [#tpu.dimension_semantics<parallel>], iteration_bounds = array<i64: 2>, scalar_prefetch = 0 : i64, scratch_operands = 0 : i64, tpu.core_type = #tpu.core_type<tc>, window_params = [{transform_indices = @transform_0, window_bounds = array<i64: 32, 36>}, {pipeline_mode = #tpu.pipeline_mode<synchronous>, transform_indices = @transform_1, window_bounds = array<i64: 36, 512>}, {pipeline_mode = #tpu.pipeline_mode<synchronous>, transform_indices = @transform_2, window_bounds = array<i64: 1, 512>}, {pipeline_mode = #tpu.pipeline_mode<synchronous>, transform_indices = @transform_3, window_bounds = array<i64: 512, 256>}, {pipeline_mode = #tpu.pipeline_mode<synchronous>, transform_indices = @transform_4, window_bounds = array<i64: 1, 256>}, {pipeline_mode = #tpu.pipeline_mode<synchronous>, transform_indices = @transform_5, window_bounds = array<i64: 256, 128>}, {pipeline_mode = #tpu.pipeline_mode<synchronous>, transform_indices = @transform_6, window_bounds = array<i64: 1, 128>}, {pipeline_mode = #tpu.pipeline_mode<synchronous>, transform_indices = @transform_7, window_bounds = array<i64: 128, 4>}, {pipeline_mode = #tpu.pipeline_mode<synchronous>, transform_indices = @transform_8, window_bounds = array<i64: 1, 4>}, {transform_indices = @transform_9, window_bounds = array<i64: 32, 4>}]} {
    %c0 = arith.constant 0 : index
    %c0_0 = arith.constant 0 : index
    %0 = vector.load %arg1[%c0, %c0_0] : memref<32x36xf32, #tpu.memory_space<vmem>>, vector<32x36xf32>
    %1 = arith.truncf %0 : vector<32x36xf32> to vector<32x36xbf16>
    %c0_1 = arith.constant 0 : index
    %c0_2 = arith.constant 0 : index
    %2 = vector.load %arg2[%c0_1, %c0_2] : memref<36x512xbf16, #tpu.memory_space<vmem>>, vector<36x512xbf16>
    %cst = arith.constant dense<0.000000e+00> : vector<32x512xf32>
    %3 = tpu.matmul %1, %2, %cst {dimension_numbers = #tpu.dot_dimension_numbers<[1], [0], [0], [1], [0, 0, 1, 1], [], []>} : vector<32x36xbf16>, vector<36x512xbf16>, vector<32x512xf32> -> vector<32x512xf32>
    %c0_3 = arith.constant 0 : index
    %c0_4 = arith.constant 0 : index
    %4 = vector.load %arg3[%c0_3, %c0_4] : memref<1x512xf32, #tpu.memory_space<vmem>>, vector<1x512xf32>
    %5 = vector.broadcast %4 : vector<1x512xf32> to vector<32x512xf32>
    %6 = arith.addf %3, %5 : vector<32x512xf32>
    %cst_5 = arith.constant 0.000000e+00 : f32
    %7 = vector.broadcast %cst_5 : f32 to vector<32x512xf32>
    %8 = arith.maximumf %6, %7 : vector<32x512xf32>
    %9 = arith.truncf %8 : vector<32x512xf32> to vector<32x512xbf16>
    %c0_6 = arith.constant 0 : index
    %c0_7 = arith.constant 0 : index
    %10 = vector.load %arg4[%c0_6, %c0_7] : memref<512x256xbf16, #tpu.memory_space<vmem>>, vector<512x256xbf16>
    %cst_8 = arith.constant dense<0.000000e+00> : vector<32x256xf32>
    %11 = tpu.matmul %9, %10, %cst_8 {dimension_numbers = #tpu.dot_dimension_numbers<[1], [0], [0], [1], [0, 0, 1, 1], [], []>} : vector<32x512xbf16>, vector<512x256xbf16>, vector<32x256xf32> -> vector<32x256xf32>
    %c0_9 = arith.constant 0 : index
    %c0_10 = arith.constant 0 : index
    %12 = vector.load %arg5[%c0_9, %c0_10] : memref<1x256xf32, #tpu.memory_space<vmem>>, vector<1x256xf32>
    %13 = vector.broadcast %12 : vector<1x256xf32> to vector<32x256xf32>
    %14 = arith.addf %11, %13 : vector<32x256xf32>
    %cst_11 = arith.constant 0.000000e+00 : f32
    %15 = vector.broadcast %cst_11 : f32 to vector<32x256xf32>
    %16 = arith.maximumf %14, %15 : vector<32x256xf32>
    %17 = arith.truncf %16 : vector<32x256xf32> to vector<32x256xbf16>
    %c0_12 = arith.constant 0 : index
    %c0_13 = arith.constant 0 : index
    %18 = vector.load %arg6[%c0_12, %c0_13] : memref<256x128xbf16, #tpu.memory_space<vmem>>, vector<256x128xbf16>
    %cst_14 = arith.constant dense<0.000000e+00> : vector<32x128xf32>
    %19 = tpu.matmul %17, %18, %cst_14 {dimension_numbers = #tpu.dot_dimension_numbers<[1], [0], [0], [1], [0, 0, 1, 1], [], []>} : vector<32x256xbf16>, vector<256x128xbf16>, vector<32x128xf32> -> vector<32x128xf32>
    %c0_15 = arith.constant 0 : index
    %c0_16 = arith.constant 0 : index
    %20 = vector.load %arg7[%c0_15, %c0_16] : memref<1x128xf32, #tpu.memory_space<vmem>>, vector<1x128xf32>
    %21 = vector.broadcast %20 : vector<1x128xf32> to vector<32x128xf32>
    %22 = arith.addf %19, %21 : vector<32x128xf32>
    %cst_17 = arith.constant 0.000000e+00 : f32
    %23 = vector.broadcast %cst_17 : f32 to vector<32x128xf32>
    %24 = arith.maximumf %22, %23 : vector<32x128xf32>
    %25 = arith.truncf %24 : vector<32x128xf32> to vector<32x128xbf16>
    %c0_18 = arith.constant 0 : index
    %c0_19 = arith.constant 0 : index
    %26 = vector.load %arg8[%c0_18, %c0_19] : memref<128x4xbf16, #tpu.memory_space<vmem>>, vector<128x4xbf16>
    %cst_20 = arith.constant dense<0.000000e+00> : vector<32x4xf32>
    %27 = tpu.matmul %25, %26, %cst_20 {dimension_numbers = #tpu.dot_dimension_numbers<[1], [0], [0], [1], [0, 0, 1, 1], [], []>} : vector<32x128xbf16>, vector<128x4xbf16>, vector<32x4xf32> -> vector<32x4xf32>
    %c0_21 = arith.constant 0 : index
    %c0_22 = arith.constant 0 : index
    %28 = vector.load %arg9[%c0_21, %c0_22] : memref<1x4xf32, #tpu.memory_space<vmem>>, vector<1x4xf32>
    %29 = vector.broadcast %28 : vector<1x4xf32> to vector<32x4xf32>
    %30 = arith.addf %27, %29 : vector<32x4xf32>
    %c0_23 = arith.constant 0 : index
    %c0_24 = arith.constant 0 : index
    %31 = vector.load %arg10[%c0_23, %c0_24] : memref<32x4xf32, #tpu.memory_space<vmem>>, vector<32x4xf32>
    tpu.vector_store %arg10[%c0_23, %c0_24], %30 {strides = array<i32>} : memref<32x4xf32, #tpu.memory_space<vmem>>, vector<32x4xf32>,
    return
  }
  func.func @transform_0(%arg0: i32) -> (i32, i32) {
    %c0_i32 = arith.constant 0 : i32
    %c0_i32_0 = arith.constant 0 : i32
    return %arg0, %c0_i32 : i32, i32
  }
  func.func @transform_1(%arg0: i32) -> (i32, i32) {
    %c0_i32 = arith.constant 0 : i32
    %c0_i32_0 = arith.constant 0 : i32
    %c0_i32_1 = arith.constant 0 : i32
    return %c0_i32, %c0_i32_0 : i32, i32
  }
  func.func @transform_2(%arg0: i32) -> (i32, i32) {
    %c0_i32 = arith.constant 0 : i32
    %c0_i32_0 = arith.constant 0 : i32
    %c0_i32_1 = arith.constant 0 : i32
    return %c0_i32, %c0_i32_0 : i32, i32
  }
  func.func @transform_3(%arg0: i32) -> (i32, i32) {
    %c0_i32 = arith.constant 0 : i32
    %c0_i32_0 = arith.constant 0 : i32
    %c0_i32_1 = arith.constant 0 : i32
    return %c0_i32, %c0_i32_0 : i32, i32
  }
  func.func @transform_4(%arg0: i32) -> (i32, i32) {
    %c0_i32 = arith.constant 0 : i32
    %c0_i32_0 = arith.constant 0 : i32
    %c0_i32_1 = arith.constant 0 : i32
    return %c0_i32, %c0_i32_0 : i32, i32
  }
  func.func @transform_5(%arg0: i32) -> (i32, i32) {
    %c0_i32 = arith.constant 0 : i32
    %c0_i32_0 = arith.constant 0 : i32
    %c0_i32_1 = arith.constant 0 : i32
    return %c0_i32, %c0_i32_0 : i32, i32
  }
  func.func @transform_6(%arg0: i32) -> (i32, i32) {
    %c0_i32 = arith.constant 0 : i32
    %c0_i32_0 = arith.constant 0 : i32
    %c0_i32_1 = arith.constant 0 : i32
    return %c0_i32, %c0_i32_0 : i32, i32
  }
  func.func @transform_7(%arg0: i32) -> (i32, i32) {
    %c0_i32 = arith.constant 0 : i32
    %c0_i32_0 = arith.constant 0 : i32
    %c0_i32_1 = arith.constant 0 : i32
    return %c0_i32, %c0_i32_0 : i32, i32
  }
  func.func @transform_8(%arg0: i32) -> (i32, i32) {
    %c0_i32 = arith.constant 0 : i32
    %c0_i32_0 = arith.constant 0 : i32
    %c0_i32_1 = arith.constant 0 : i32
    return %c0_i32, %c0_i32_0 : i32, i32
  }
  func.func @transform_9(%arg0: i32) -> (i32, i32) {
    %c0_i32 = arith.constant 0 : i32
    %c0_i32_0 = arith.constant 0 : i32
    return %arg0, %c0_i32 : i32, i32
  }
}

</mosaic_0001>

<llo_original>
// kernel: keypoint_mlp_forward.1
$region0: #{keypoint_mlp_forward.1}
  #allocation0 [shape = 'u32[]', space=smem, size = 0x4, offset = 0x4, fixed_abs, tag = 'smem constant byte address 0x4 - core index']
  #allocation1 [shape = 'u32[144,128]{1,0:T(1,128)}', space=vmem, size = 0x12000, scoped, tag = 'internal scratch']
  %s0 = inlined_call_operand.vmem [shape: f32[64,36], index: 0, kind: input, shape index: {}]
  %s1 = inlined_call_operand.hbm [shape: bf16[36,512], index: 1, kind: input, shape index: {}]
  %s2 = inlined_call_operand.vmem [shape: f32[1,512], index: 2, kind: input, shape index: {}]
  %s3 = inlined_call_operand.hbm [shape: bf16[512,256], index: 3, kind: input, shape index: {}]
  %s4 = inlined_call_operand.vmem [shape: f32[1,256], index: 4, kind: input, shape index: {}]
  %s5 = inlined_call_operand.vmem [shape: bf16[256,128], index: 5, kind: input, shape index: {}]
  %s6 = inlined_call_operand.vmem [shape: f32[1,128], index: 6, kind: input, shape index: {}]
  %s7 = inlined_call_operand.vmem [shape: bf16[128,4], index: 7, kind: input, shape index: {}]
  %s8 = inlined_call_operand.vmem [shape: f32[1,4], index: 8, kind: input, shape index: {}]
  %s9 = inlined_call_operand.vmem [shape: f32[64,4], index: 9, kind: output, shape index: {}]
  %s10 = sld [smem:[#allocation0]]
  $region77: #{keypoint_mlp_forward.1} parent=0
    _
  %s12 = ssub.s32 1, %s10
  %s13 = scalar_select 0, %s12, %s10
  $region1: #{keypoint_mlp_forward.1} parent=0
    #allocation2 [shape = 'u8[40960]{0}', space=vmem, size = 0xa000, scoped, tag = 'input window, operand 1, single buffered']
    #allocation3 [shape = 's32[2]{0}', space=sflag, size = 0x8, scoped, tag = 'scoped memory for keypoint_mlp_forward.1']
    #allocation4 [shape = 'u8[262144]{0}', space=vmem, size = 0x40000, scoped, tag = 'input window, operand 3, single buffered']
    #allocation5 [shape = 's32[1]{0}', space=sflag, size = 0x4, scoped, tag = 'scoped memory for keypoint_mlp_forward.1']
    %14 = vsyncpa [#allocation3], 0
    %15 = vsyncpa [#allocation5], 0
    loop: start=0, step=1, limit=4
    $region2: #{keypoint_mlp_forward.1} parent=1 // loop_pre_header
      _
    $region3: #{keypoint_mlp_forward.1} parent=1 // loop_header
      %s17 = sphi 0, %s21
      %p18 = scmp.ge.s32.totalorder %s17, 4
      %s27 = sphi 0, %s29
      %s30 = sphi 0, %s27
      %s31 = sphi 0, %s30
      %s47 = sphi 0, %s31
      %s51 = sphi 0, %s51
      %s53 = sphi 0, %s51
      %s54 = sphi 0, %s53
      %s68 = sphi 0, %s54
      %s72 = sphi 0, %s72
      %s74 = sphi 0, %s72
      %s75 = sphi 0, %s74
      %s89 = sphi 0, %s75
      %s93 = sphi 0, %s93
      %s95 = sphi 0, %s93
      %s96 = sphi 0, %s95
      %s110 = sphi 0, %s96
      %s114 = sphi 0, %s114
      %s116 = sphi 0, %s114
      %s117 = sphi 0, %s116
      %s131 = sphi 0, %s117
      %s135 = sphi 0, %s135
      %s137 = sphi 0, %s135
      %s138 = sphi 0, %s137
      %s152 = sphi 0, %s138
      %s156 = sphi 0, %s156
      %s158 = sphi 0, %s156
      %s159 = sphi 0, %s158
      %s173 = sphi 0, %s159
      %s177 = sphi 0, %s177
      %s179 = sphi 0, %s177
      %s180 = sphi 0, %s179
      %s194 = sphi 0, %s180
      %s198 = sphi 0, %s198
      %s200 = sphi 0, %s198
      %s201 = sphi 0, %s200
      %s215 = sphi 0, %s201
      %s221 = sphi 0, %s223
      %s224 = sphi 0, %s221
      %s225 = sphi 0, %s224
      %s241 = sphi 0, %s225
    $region4: #{keypoint_mlp_forward.1} parent=1 // loop_header_branch
      %20 = sbr.rel (%p18) target = $region8
    $region5: #{keypoint_mlp_forward.1} parent=1 // loop_body
      %s22 = ssub.s32 %s17, 1
      %s23 = ssub.s32 %s17, 2
      %s24 = sadd.s32 %s17, 1
      %s25 = ssub.s32 %s17, %s24
      %p26 = scmp.eq.s32.totalorder %s25, 0
      %s28 = sadd.s32 %s27, 1
      %s29 = scalar_select %p26, %s27, %s28
      %p32 = pneg %p26
      %p33 = scmp.eq.s32.totalorder %s17, 1
      %p34 = por %p32, %p33
      %p35 = scmp.ne.s32.totalorder %s27, %s30
      %p36 = scmp.eq.s32.totalorder %s17, 0
      %p37 = por %p35, %p36
      %p38 = scmp.ne.s32.totalorder %s27, %s30
      %p39 = scmp.eq.s32.totalorder %s22, 1
      %p40 = por %p38, %p39
      %p41 = scmp.ne.s32.totalorder %s30, %s31
      %p42 = scmp.eq.s32.totalorder %s22, 0
      %p43 = por %p41, %p42
      %p44 = scmp.ne.s32.totalorder %s30, %s31
      %p45 = scmp.eq.s32.totalorder %s23, 1
      %p46 = por %p44, %p45
      %p48 = scmp.ne.s32.totalorder %s31, %s47
      %p49 = scmp.eq.s32.totalorder %s23, 0
      %p50 = por %p48, %p49
      %s52 = sadd.s32 %s51, 1
      %p55 = scmp.eq.s32.totalorder %s17, 1
      %p56 = scmp.ne.s32.totalorder %s51, %s53
      %p57 = scmp.eq.s32.totalorder %s17, 0
      %p58 = por %p56, %p57
      %p59 = scmp.ne.s32.totalorder %s51, %s53
      %p60 = scmp.eq.s32.totalorder %s22, 1
      %p61 = por %p59, %p60
      %p62 = scmp.ne.s32.totalorder %s53, %s54
      %p63 = scmp.eq.s32.totalorder %s22, 0
      %p64 = por %p62, %p63
      %p65 = scmp.ne.s32.totalorder %s53, %s54
      %p66 = scmp.eq.s32.totalorder %s23, 1
      %p67 = por %p65, %p66
      %p69 = scmp.ne.s32.totalorder %s54, %s68
      %p70 = scmp.eq.s32.totalorder %s23, 0
      %p71 = por %p69, %p70
      %s73 = sadd.s32 %s72, 1
      %p76 = scmp.eq.s32.totalorder %s17, 1
      %p77 = scmp.ne.s32.totalorder %s72, %s74
      %p78 = scmp.eq.s32.totalorder %s17, 0
      %p79 = por %p77, %p78
      %p80 = scmp.ne.s32.totalorder %s72, %s74
      %p81 = scmp.eq.s32.totalorder %s22, 1
      %p82 = por %p80, %p81
      %p83 = scmp.ne.s32.totalorder %s74, %s75
      %p84 = scmp.eq.s32.totalorder %s22, 0
      %p85 = por %p83, %p84
      %p86 = scmp.ne.s32.totalorder %s74, %s75
      %p87 = scmp.eq.s32.totalorder %s23, 1
      %p88 = por %p86, %p87
      %p90 = scmp.ne.s32.totalorder %s75, %s89
      %p91 = scmp.eq.s32.totalorder %s23, 0
      %p92 = por %p90, %p91
      %s94 = sadd.s32 %s93, 1
      %p97 = scmp.eq.s32.totalorder %s17, 1
      %p98 = scmp.ne.s32.totalorder %s93, %s95
      %p99 = scmp.eq.s32.totalorder %s17, 0
      %p100 = por %p98, %p99
      %p101 = scmp.ne.s32.totalorder %s93, %s95
      %p102 = scmp.eq.s32.totalorder %s22, 1
      %p103 = por %p101, %p102
      %p104 = scmp.ne.s32.totalorder %s95, %s96
      %p105 = scmp.eq.s32.totalorder %s22, 0
      %p106 = por %p104, %p105
      %p107 = scmp.ne.s32.totalorder %s95, %s96
      %p108 = scmp.eq.s32.totalorder %s23, 1
      %p109 = por %p107, %p108
      %p111 = scmp.ne.s32.totalorder %s96, %s110
      %p112 = scmp.eq.s32.totalorder %s23, 0
      %p113 = por %p111, %p112
      %s115 = sadd.s32 %s114, 1
      %p118 = scmp.eq.s32.totalorder %s17, 1
      %p119 = scmp.ne.s32.totalorder %s114, %s116
      %p120 = scmp.eq.s32.totalorder %s17, 0
      %p121 = por %p119, %p120
      %p122 = scmp.ne.s32.totalorder %s114, %s116
      %p123 = scmp.eq.s32.totalorder %s22, 1
      %p124 = por %p122, %p123
      %p125 = scmp.ne.s32.totalorder %s116, %s117
      %p126 = scmp.eq.s32.totalorder %s22, 0
      %p127 = por %p125, %p126
      %p128 = scmp.ne.s32.totalorder %s116, %s117
      %p129 = scmp.eq.s32.totalorder %s23, 1
      %p130 = por %p128, %p129
      %p132 = scmp.ne.s32.totalorder %s117, %s131
      %p133 = scmp.eq.s32.totalorder %s23, 0
      %p134 = por %p132, %p133
      %s136 = sadd.s32 %s135, 1
      %p139 = scmp.eq.s32.totalorder %s17, 1
      %p140 = scmp.ne.s32.totalorder %s135, %s137
      %p141 = scmp.eq.s32.totalorder %s17, 0
      %p142 = por %p140, %p141
      %p143 = scmp.ne.s32.totalorder %s135, %s137
      %p144 = scmp.eq.s32.totalorder %s22, 1
      %p145 = por %p143, %p144
      %p146 = scmp.ne.s32.totalorder %s137, %s138
      %p147 = scmp.eq.s32.totalorder %s22, 0
      %p148 = por %p146, %p147
      %p149 = scmp.ne.s32.totalorder %s137, %s138
      %p150 = scmp.eq.s32.totalorder %s23, 1
      %p151 = por %p149, %p150
      %p153 = scmp.ne.s32.totalorder %s138, %s152
      %p154 = scmp.eq.s32.totalorder %s23, 0
      %p155 = por %p153, %p154
      %s157 = sadd.s32 %s156, 1
      %p160 = scmp.eq.s32.totalorder %s17, 1
      %p161 = scmp.ne.s32.totalorder %s156, %s158
      %p162 = scmp.eq.s32.totalorder %s17, 0
      %p163 = por %p161, %p162
      %p164 = scmp.ne.s32.totalorder %s156, %s158
      %p165 = scmp.eq.s32.totalorder %s22, 1
      %p166 = por %p164, %p165
      %p167 = scmp.ne.s32.totalorder %s158, %s159
      %p168 = scmp.eq.s32.totalorder %s22, 0
      %p169 = por %p167, %p168
      %p170 = scmp.ne.s32.totalorder %s158, %s159
      %p171 = scmp.eq.s32.totalorder %s23, 1
      %p172 = por %p170, %p171
      %p174 = scmp.ne.s32.totalorder %s159, %s173
      %p175 = scmp.eq.s32.totalorder %s23, 0
      %p176 = por %p174, %p175
      %s178 = sadd.s32 %s177, 1
      %p181 = scmp.eq.s32.totalorder %s17, 1
      %p182 = scmp.ne.s32.totalorder %s177, %s179
      %p183 = scmp.eq.s32.totalorder %s17, 0
      %p184 = por %p182, %p183
      %p185 = scmp.ne.s32.totalorder %s177, %s179
      %p186 = scmp.eq.s32.totalorder %s22, 1
      %p187 = por %p185, %p186
      %p188 = scmp.ne.s32.totalorder %s179, %s180
      %p189 = scmp.eq.s32.totalorder %s22, 0
      %p190 = por %p188, %p189
      %p191 = scmp.ne.s32.totalorder %s179, %s180
      %p192 = scmp.eq.s32.totalorder %s23, 1
      %p193 = por %p191, %p192
      %p195 = scmp.ne.s32.totalorder %s180, %s194
      %p196 = scmp.eq.s32.totalorder %s23, 0
      %p197 = por %p195, %p196
      %s199 = sadd.s32 %s198, 1
      %p202 = scmp.eq.s32.totalorder %s17, 1
      %p203 = scmp.ne.s32.totalorder %s198, %s200
      %p204 = scmp.eq.s32.totalorder %s17, 0
      %p205 = por %p203, %p204
      %p206 = scmp.ne.s32.totalorder %s198, %s200
      %p207 = scmp.eq.s32.totalorder %s22, 1
      %p208 = por %p206, %p207
      %p209 = scmp.ne.s32.totalorder %s200, %s201
      %p210 = scmp.eq.s32.totalorder %s22, 0
      %p211 = por %p209, %p210
      %p212 = scmp.ne.s32.totalorder %s200, %s201
      %p213 = scmp.eq.s32.totalorder %s23, 1
      %p214 = por %p212, %p213
      %p216 = scmp.ne.s32.totalorder %s201, %s215
      %p217 = scmp.eq.s32.totalorder %s23, 0
      %p218 = por %p216, %p217
      %s219 = ssub.s32 %s17, %s24
      %p220 = scmp.eq.s32.totalorder %s219, 0
      %s222 = sadd.s32 %s221, 1
      %s223 = scalar_select %p220, %s221, %s222
      %p226 = pneg %p220
      %p227 = scmp.eq.s32.totalorder %s17, 1
      %p228 = por %p226, %p227
      %p229 = scmp.ne.s32.totalorder %s221, %s224
      %p230 = scmp.eq.s32.totalorder %s17, 0
      %p231 = por %p229, %p230
      %p232 = scmp.ne.s32.totalorder %s221, %s224
      %p233 = scmp.eq.s32.totalorder %s22, 1
      %p234 = por %p232, %p233
      %p235 = scmp.ne.s32.totalorder %s224, %s225
      %p236 = scmp.eq.s32.totalorder %s22, 0
      %p237 = por %p235, %p236
      %p238 = scmp.ne.s32.totalorder %s224, %s225
      %p239 = scmp.eq.s32.totalorder %s23, 1
      %p240 = por %p238, %p239
      %p242 = scmp.ne.s32.totalorder %s225, %s241
      %p243 = scmp.eq.s32.totalorder %s23, 0
      %p244 = por %p242, %p243
      %p245 = scmp.le.s32.totalorder 1, %s17
      %p246 = scmp.lt.s32.totalorder %s17, 3
      %p247 = pnand %p245, %p246
      %p248 = pneg %p247
      // Predicated region
      $region9: #{keypoint_mlp_forward.1} parent=5 // pred_check
        _
      $region10: #{keypoint_mlp_forward.1} parent=5 // pred_check_branch
        %250 = sbr.rel (%p247) target = $region12
      $region11: #{keypoint_mlp_forward.1} parent=5 // pred_region
        %s251 = ssub.s32 %s17, 1
        // Predicated region
        $region13: #{keypoint_mlp_forward.1} parent=11 // pred_check
          %p252 = pneg %p64
        $region14: #{keypoint_mlp_forward.1} parent=11 // pred_check_branch
          %254 = sbr.rel (%p252) target = $region16
        $region15: #{keypoint_mlp_forward.1} parent=11 // pred_region
          %s256 = ssub.s32 1280, 1280
          %257 = vsyncadd [#allocation3], %s256
          %s258 = sshll.u32 [#allocation2], 4
          %s259 = int_to_ptr.vmem [resolvable:$true] %s258
          %264 = dma.hbm_to_vmem [thread:$0]  %s1, 1280, %s259, [#allocation3], 256, 256, 16
        $region16: #{keypoint_mlp_forward.1} parent=11 // pred_fallthru
          _
        // Predicated region
        $region17: #{keypoint_mlp_forward.1} parent=11 // pred_check
          %p265 = pneg %p85
        $region18: #{keypoint_mlp_forward.1} parent=11 // pred_check_branch
          %267 = sbr.rel (%p265) target = $region20
        $region19: #{keypoint_mlp_forward.1} parent=11 // pred_region
          _
        $region20: #{keypoint_mlp_forward.1} parent=11 // pred_fallthru
          _
        // Predicated region
        $region21: #{keypoint_mlp_forward.1} parent=11 // pred_check
          %p268 = pneg %p106
        $region22: #{keypoint_mlp_forward.1} parent=11 // pred_check_branch
          %270 = sbr.rel (%p268) target = $region24
        $region23: #{keypoint_mlp_forward.1} parent=11 // pred_region
          %s272 = ssub.s32 8192, 8192
          %273 = vsyncadd [#allocation5], %s272
          %s274 = sshll.u32 [#allocation4], 4
          %s275 = int_to_ptr.vmem [resolvable:$true] %s274
          %280 = dma.hbm_to_vmem [thread:$0]  %s3, 8192, %s275, [#allocation5], 128, 128, 8
        $region24: #{keypoint_mlp_forward.1} parent=11 // pred_fallthru
          _
        // Predicated region
        $region25: #{keypoint_mlp_forward.1} parent=11 // pred_check
          %p281 = pneg %p127
        $region26: #{keypoint_mlp_forward.1} parent=11 // pred_check_branch
          %283 = sbr.rel (%p281) target = $region28
        $region27: #{keypoint_mlp_forward.1} parent=11 // pred_region
          _
        $region28: #{keypoint_mlp_forward.1} parent=11 // pred_fallthru
          _
        // Predicated region
        $region29: #{keypoint_mlp_forward.1} parent=11 // pred_check
          %p284 = pneg %p148
        $region30: #{keypoint_mlp_forward.1} parent=11 // pred_check_branch
          %286 = sbr.rel (%p284) target = $region32
        $region31: #{keypoint_mlp_forward.1} parent=11 // pred_region
          _
        $region32: #{keypoint_mlp_forward.1} parent=11 // pred_fallthru
          _
        // Predicated region
        $region33: #{keypoint_mlp_forward.1} parent=11 // pred_check
          %p287 = pneg %p169
        $region34: #{keypoint_mlp_forward.1} parent=11 // pred_check_branch
          %289 = sbr.rel (%p287) target = $region36
        $region35: #{keypoint_mlp_forward.1} parent=11 // pred_region
          _
        $region36: #{keypoint_mlp_forward.1} parent=11 // pred_fallthru
          _
        // Predicated region
        $region37: #{keypoint_mlp_forward.1} parent=11 // pred_check
          %p290 = pneg %p190
        $region38: #{keypoint_mlp_forward.1} parent=11 // pred_check_branch
          %292 = sbr.rel (%p290) target = $region40
        $region39: #{keypoint_mlp_forward.1} parent=11 // pred_region
          _
        $region40: #{keypoint_mlp_forward.1} parent=11 // pred_fallthru
          _
        // Predicated region
        $region41: #{keypoint_mlp_forward.1} parent=11 // pred_check
          %p293 = pneg %p211
        $region42: #{keypoint_mlp_forward.1} parent=11 // pred_check_branch
          %295 = sbr.rel (%p293) target = $region44
        $region43: #{keypoint_mlp_forward.1} parent=11 // pred_region
          _
        $region44: #{keypoint_mlp_forward.1} parent=11 // pred_fallthru
          _
      $region12: #{keypoint_mlp_forward.1} parent=5 // pred_fallthru
        _
      %p296 = scmp.lt.s32.totalorder %s17, 2
      // Predicated region
      $region45: #{keypoint_mlp_forward.1} parent=5 // pred_check
        %p297 = pneg %p296
      $region46: #{keypoint_mlp_forward.1} parent=5 // pred_check_branch
        %299 = sbr.rel (%p297) target = $region48
      $region47: #{keypoint_mlp_forward.1} parent=5 // pred_region
        // Predicated region
        $region49: #{keypoint_mlp_forward.1} parent=47 // pred_check
          %p300 = pneg %p37
        $region50: #{keypoint_mlp_forward.1} parent=47 // pred_check_branch
          %302 = sbr.rel (%p300) target = $region52
        $region51: #{keypoint_mlp_forward.1} parent=47 // pred_region
          %s303 = smul.u32 4, %s17
          %p304 = scmp.lt.s32.totalorder %s303, 7
          %s305 = scalar_select %p304, %s303, 7
          %s306 = smul.addr %s305, 8
          %s307 = scalar_lea.vmem %s0, %s306
          %s308 = smul.u32 4, %s17
        $region52: #{keypoint_mlp_forward.1} parent=47 // pred_fallthru
          _
      $region48: #{keypoint_mlp_forward.1} parent=5 // pred_fallthru
        _
      %p309 = scmp.le.s32.totalorder 1, %s17
      %p310 = scmp.lt.s32.totalorder %s17, 3
      %p311 = pnand %p309, %p310
      %p312 = pneg %p311
      // Predicated region
      $region53: #{keypoint_mlp_forward.1} parent=5 // pred_check
        _
      $region54: #{keypoint_mlp_forward.1} parent=5 // pred_check_branch
        %314 = sbr.rel (%p311) target = $region56
      $region55: #{keypoint_mlp_forward.1} parent=5 // pred_region
        %s315 = ssub.s32 %s17, 1
        // Predicated region
        $region57: #{keypoint_mlp_forward.1} parent=55 // pred_check
          %p316 = pneg %p64
        $region58: #{keypoint_mlp_forward.1} parent=55 // pred_check_branch
          %318 = sbr.rel (%p316) target = $region60
        $region59: #{keypoint_mlp_forward.1} parent=55 // pred_region
          %319 = dma.done [#allocation3], 1280
        $region60: #{keypoint_mlp_forward.1} parent=55 // pred_fallthru
          _
        // Predicated region
        $region61: #{keypoint_mlp_forward.1} parent=55 // pred_check
          %p320 = pneg %p106
        $region62: #{keypoint_mlp_forward.1} parent=55 // pred_check_branch
          %322 = sbr.rel (%p320) target = $region64
        $region63: #{keypoint_mlp_forward.1} parent=55 // pred_region
          %323 = dma.done [#allocation5], 8192
        $region64: #{keypoint_mlp_forward.1} parent=55 // pred_fallthru
          _
        %s324 = smul.u32 4, %s22
        %p325 = scmp.lt.s32.totalorder %s324, 7
        %s326 = scalar_select %p325, %s324, 7
        %s327 = smul.addr %s326, 8
        %s328 = scalar_lea.vmem %s0, %s327
        %p329 = pneg %p43
        %p330 = pneg %p40
        %p331 = pneg %p64
        %p332 = pneg %p61
        %p333 = pneg %p85
        %p334 = pneg %p82
        %p335 = pneg %p106
        %p336 = pneg %p103
        %p337 = pneg %p127
        %p338 = pneg %p124
        %p339 = pneg %p148
        %p340 = pneg %p145
        %p341 = pneg %p169
        %p342 = pneg %p166
        %p343 = pneg %p190
        %p344 = pneg %p187
        %p345 = pneg %p211
        %p346 = pneg %p208
        %p347 = pneg %p237
        %p348 = pneg %p234
        %s349 = smul.u32 4, %s22
        %p350 = scmp.lt.s32.totalorder %s349, 7
        %s351 = scalar_select %p350, %s349, 7
        %s352 = smul.addr %s351, 8
        %s353 = scalar_lea.vmem %s9, %s352
        %s354 = smul.u32 4, %s22
        %p355 = scmp.lt.s32.totalorder %s354, 7
        %s356 = scalar_select %p355, %s354, 7
        %s357 = smul.addr %s356, 8
        %s358 = scalar_lea.vmem %s0, %s357
        %s359 = smul.u32 4, %s22
        %s360 = smul.u32 4, %s22
        %p361 = scmp.lt.s32.totalorder %s360, 7
        %s362 = scalar_select %p361, %s360, 7
        %s363 = smul.addr %s362, 8
        %s364 = scalar_lea.vmem %s9, %s363
        %s365 = smul.u32 4, %s22
        %v367 = vld [vmem:[%s358] sm:$0xff]
        %v368 = vld [vmem:[%s358 + $0x8] sm:$0xff]
        %v369 = vld [vmem:[%s358 + $0x10] sm:$0xff]
        %v370 = vld [vmem:[%s358 + $0x18] sm:$0xff]
        %v371 = vpack.c.bf16 %v368, %v367
        %v372 = vpack.c.bf16 %v370, %v369
        %v373 = vld [vmem:[#allocation2] sm:$0xff]
        %v374 = vld [vmem:[#allocation2 + $0x8] sm:$0xff]
        %v375 = vld [vmem:[#allocation2 + $0x10] sm:$0xff]
        %v376 = vld [vmem:[#allocation2 + $0x18] sm:$0xff]
        %v377 = vld [vmem:[#allocation2 + $0x20] sm:$0xff]
        %v378 = vld [vmem:[#allocation2 + $0x28] sm:$0xff]
        %v379 = vld [vmem:[#allocation2 + $0x30] sm:$0xff]
        %v380 = vld [vmem:[#allocation2 + $0x38] sm:$0xff]
        %v381 = vld [vmem:[#allocation2 + $0x40] sm:$0x33]
        %v382 = vld [vmem:[#allocation2 + $0x48] sm:$0x33]
        %v383 = vld [vmem:[%s2] sm:$0xf]
        %v385 = vlaneseq
        %v386 = vshrl.u32 %v385, 7
        %v387 = vsub.s32 0, %v386
        %v388 = vrot.slane %v383, %v387
        %v389 = vlaneseq
        %v390 = vshrl.u32 %v389, 7
        %v391 = vsub.s32 1, %v390
        %v392 = vrot.slane %v383, %v391
        %v393 = vlaneseq
        %v394 = vshrl.u32 %v393, 7
        %v395 = vsub.s32 2, %v394
        %v396 = vrot.slane %v383, %v395
        %v397 = vlaneseq
        %v398 = vshrl.u32 %v397, 7
        %v399 = vsub.s32 3, %v398
        %v400 = vrot.slane %v383, %v399
        %v415 = vunpack.c.l.b16 %v373
        %v416 = vunpack.c.h.b16 %v373
        %v417 = vunpack.c.l.b16 %v374
        %v418 = vunpack.c.h.b16 %v374
        %v419 = vunpack.c.l.b16 %v375
        %v420 = vunpack.c.h.b16 %v375
        %v421 = vunpack.c.l.b16 %v376
        %v422 = vunpack.c.h.b16 %v376
        %v423 = vunpack.c.l.b16 %v377
        %v424 = vunpack.c.h.b16 %v377
        %v425 = vunpack.c.l.b16 %v378
        %v426 = vunpack.c.h.b16 %v378
        %v427 = vunpack.c.l.b16 %v379
        %v428 = vunpack.c.h.b16 %v379
        %v429 = vunpack.c.l.b16 %v380
        %v430 = vunpack.c.h.b16 %v380
        %v431 = vunpack.c.l.b16 %v381
        %v432 = vunpack.c.h.b16 %v381
        %v433 = vunpack.c.l.b16 %v382
        %v434 = vunpack.c.h.b16 %v382
        %v435 = vpack.c.b16 %v419, %v415
        %v436 = vpack.c.b16 %v420, %v416
        %v437 = vpack.c.b16 %v421, %v417
        %v438 = vpack.c.b16 %v422, %v418
        %v439 = vpack.c.b16 %v427, %v423
        %v440 = vpack.c.b16 %v428, %v424
        %v441 = vpack.c.b16 %v429, %v425
        %v442 = vpack.c.b16 %v430, %v426
        %v443 = vpack.c.b16 %v431, %v431
        %v444 = vpack.c.b16 %v432, %v432
        %v445 = vpack.c.b16 %v433, %v433
        %v446 = vpack.c.b16 %v434, %v434
        %vm455 = vcmask 293888
        %v457 = vsel %vm455, %v371, 0
        %v460 = vsel %vm455, %v372, 0
        %vm462 = vcmask 1041408
        %v464 = vsel %vm462, %v443, 0
        %v467 = vsel %vm462, %v444, 0
        %v470 = vsel %vm462, %v445, 0
        %v473 = vsel %vm462, %v446, 0
        %475 = vmatprep.subr.bf16.mxu0 0
        %476 = vmatpush1.bf16.msra.mxu0 0
        %477 = vmatprep.subr.bf16.mxu0 0
        %478 = vmatpush1.bf16.msra.mxu0 0
        %479 = vmatprep.subr.bf16.mxu0 0
        %480 = vmatpush1.bf16.msra.mxu0 0
        %481 = vmatprep.subr.bf16.mxu0 0
        %482 = vmatpush1.bf16.msra.mxu0 0
        %483 = vmatprep.subr.bf16.mxu0 0
        %484 = vmatpush1.bf16.msra.mxu0 0
        %485 = vmatprep.subr.bf16.mxu0 %v467
        %486 = vmatpush1.bf16.msra.mxu0 %v464
        %487 = vmatprep.subr.bf16.mxu0 %v440
        %488 = vmatpush1.bf16.msra.mxu0 %v439
        %489 = vmatprep.subr.bf16.mxu0 %v436
        %490 = vmatpush1.bf16.msra.mxu0 %v435
        %491 = vmatprep.subr.bf16.mxu0 0
        %492 = vmatpush2.bf16.msra.mxu0 0
        %493 = vmatprep.subr.bf16.mxu0 0
        %494 = vmatpush2.bf16.msra.mxu0 0
        %495 = vmatprep.subr.bf16.mxu0 0
        %496 = vmatpush2.bf16.msra.mxu0 0
        %497 = vmatprep.subr.bf16.mxu0 0
        %498 = vmatpush2.bf16.msra.mxu0 0
        %499 = vmatprep.subr.bf16.mxu0 0
        %500 = vmatpush2.bf16.msra.mxu0 0
        %501 = vmatprep.subr.bf16.mxu0 0
        %502 = vmatpush2.bf16.msra.mxu0 0
        %503 = vmatprep.subr.bf16.mxu0 0
        %504 = vmatpush2.bf16.msra.mxu0 0
        %505 = vmatprep.subr.bf16.mxu0 0
        %506 = vmatpush2.bf16.msra.mxu0 0
        %507 = vmatprep.mubr.bf16.mxu0 0
        %508 = vmatmul.mubr.bf16.gmra.mxu0 %v457
        %v509 = vpop.f32.mrf.mxu0
        %v510 = vadd.f32 %v388, %v509
        %v511 = vpop.f32.mrf.mxu0
        %v512 = vadd.f32 %v392, %v511
        %v513 = vpop.f32.mrf.mxu0
        %v514 = vadd.f32 %v388, %v513
        %v515 = vpop.f32.mrf.mxu0
        %v516 = vadd.f32 %v392, %v515
        %517 = vmatprep.mubr.bf16.mxu0 0
        %518 = vmatmul.mubr.bf16.gmra.mxu0 %v460
        %v519 = vpop.f32.mrf.mxu0
        %v520 = vadd.f32 %v388, %v519
        %v521 = vpop.f32.mrf.mxu0
        %v522 = vadd.f32 %v392, %v521
        %v523 = vpop.f32.mrf.mxu0
        %v524 = vadd.f32 %v388, %v523
        %v525 = vpop.f32.mrf.mxu0
        %v526 = vadd.f32 %v392, %v525
        %527 = vdwg.mxu0
        %528 = vmatprep.subr.bf16.mxu0 0
        %529 = vmatpush1.bf16.msra.mxu0 0
        %530 = vmatprep.subr.bf16.mxu0 0
        %531 = vmatpush1.bf16.msra.mxu0 0
        %532 = vmatprep.subr.bf16.mxu0 0
        %533 = vmatpush1.bf16.msra.mxu0 0
        %534 = vmatprep.subr.bf16.mxu0 0
        %535 = vmatpush1.bf16.msra.mxu0 0
        %536 = vmatprep.subr.bf16.mxu0 0
        %537 = vmatpush1.bf16.msra.mxu0 0
        %538 = vmatprep.subr.bf16.mxu0 %v473
        %539 = vmatpush1.bf16.msra.mxu0 %v470
        %540 = vmatprep.subr.bf16.mxu0 %v442
        %541 = vmatpush1.bf16.msra.mxu0 %v441
        %542 = vmatprep.subr.bf16.mxu0 %v438
        %543 = vmatpush1.bf16.msra.mxu0 %v437
        %544 = vmatprep.subr.bf16.mxu0 0
        %545 = vmatpush2.bf16.msra.mxu0 0
        %546 = vmatprep.subr.bf16.mxu0 0
        %547 = vmatpush2.bf16.msra.mxu0 0
        %548 = vmatprep.subr.bf16.mxu0 0
        %549 = vmatpush2.bf16.msra.mxu0 0
        %550 = vmatprep.subr.bf16.mxu0 0
        %551 = vmatpush2.bf16.msra.mxu0 0
        %552 = vmatprep.subr.bf16.mxu0 0
        %553 = vmatpush2.bf16.msra.mxu0 0
        %554 = vmatprep.subr.bf16.mxu0 0
        %555 = vmatpush2.bf16.msra.mxu0 0
        %556 = vmatprep.subr.bf16.mxu0 0
        %557 = vmatpush2.bf16.msra.mxu0 0
        %558 = vmatprep.subr.bf16.mxu0 0
        %559 = vmatpush2.bf16.msra.mxu0 0
        %560 = vmatprep.mubr.bf16.mxu0 0
        %561 = vmatmul.mubr.bf16.gmra.mxu0 %v457
        %v562 = vpop.f32.mrf.mxu0
        %v563 = vadd.f32 %v396, %v562
        %v564 = vpop.f32.mrf.mxu0
        %v565 = vadd.f32 %v400, %v564
        %v566 = vpop.f32.mrf.mxu0
        %v567 = vadd.f32 %v396, %v566
        %v568 = vpop.f32.mrf.mxu0
        %v569 = vadd.f32 %v400, %v568
        %570 = vmatprep.mubr.bf16.mxu0 0
        %571 = vmatmul.mubr.bf16.gmra.mxu0 %v460
        %v572 = vpop.f32.mrf.mxu0
        %v573 = vadd.f32 %v396, %v572
        %v574 = vpop.f32.mrf.mxu0
        %v575 = vadd.f32 %v400, %v574
        %v576 = vpop.f32.mrf.mxu0
        %v577 = vadd.f32 %v396, %v576
        %v578 = vpop.f32.mrf.mxu0
        %v579 = vadd.f32 %v400, %v578
        %580 = vdwg.mxu0
        %v581 = vmax.f32 %v510, 0.0
        %v582 = vmax.f32 %v512, 0.0
        %v583 = vmax.f32 %v563, 0.0
        %v584 = vmax.f32 %v565, 0.0
        %v585 = vmax.f32 %v514, 0.0
        %v586 = vmax.f32 %v516, 0.0
        %v587 = vmax.f32 %v567, 0.0
        %v588 = vmax.f32 %v569, 0.0
        %v589 = vmax.f32 %v520, 0.0
        %v590 = vmax.f32 %v522, 0.0
        %v591 = vmax.f32 %v573, 0.0
        %v592 = vmax.f32 %v575, 0.0
        %v593 = vmax.f32 %v524, 0.0
        %v594 = vmax.f32 %v526, 0.0
        %v595 = vmax.f32 %v577, 0.0
        %v596 = vmax.f32 %v579, 0.0
        %v597 = vpack.c.bf16 %v585, %v581
        %v598 = vpack.c.bf16 %v586, %v582
        %v599 = vpack.c.bf16 %v587, %v583
        %v600 = vpack.c.bf16 %v588, %v584
        %v601 = vpack.c.bf16 %v593, %v589
        %v602 = vpack.c.bf16 %v594, %v590
        %v603 = vpack.c.bf16 %v595, %v591
        %v604 = vpack.c.bf16 %v596, %v592
        %v605 = vld [vmem:[#allocation4] sm:$0xff]
        %v606 = vld [vmem:[#allocation4 + $0x8] sm:$0xff]
        %v607 = vld [vmem:[#allocation4 + $0x10] sm:$0xff]
        %v608 = vld [vmem:[#allocation4 + $0x18] sm:$0xff]
        %v609 = vld [vmem:[#allocation4 + $0x20] sm:$0xff]
        %v610 = vld [vmem:[#allocation4 + $0x28] sm:$0xff]
        %v611 = vld [vmem:[#allocation4 + $0x30] sm:$0xff]
        %v612 = vld [vmem:[#allocation4 + $0x38] sm:$0xff]
        %v613 = vld [vmem:[#allocation4 + $0x40] sm:$0xff]
        %v614 = vld [vmem:[#allocation4 + $0x48] sm:$0xff]
        %v615 = vld [vmem:[#allocation4 + $0x50] sm:$0xff]
        %v616 = vld [vmem:[#allocation4 + $0x58] sm:$0xff]
        %v617 = vld [vmem:[#allocation4 + $0x60] sm:$0xff]
        %v618 = vld [vmem:[#allocation4 + $0x68] sm:$0xff]
        %v619 = vld [vmem:[#allocation4 + $0x70] sm:$0xff]
        %v620 = vld [vmem:[#allocation4 + $0x78] sm:$0xff]
        %v621 = vld [vmem:[#allocation4 + $0x80] sm:$0xff]
        %v622 = vld [vmem:[#allocation4 + $0x88] sm:$0xff]
        %v623 = vld [vmem:[#allocation4 + $0x90] sm:$0xff]
        %v624 = vld [vmem:[#allocation4 + $0x98] sm:$0xff]
        %v625 = vld [vmem:[#allocation4 + $0xa0] sm:$0xff]
        %v626 = vld [vmem:[#allocation4 + $0xa8] sm:$0xff]
        %v627 = vld [vmem:[#allocation4 + $0xb0] sm:$0xff]
        %v628 = vld [vmem:[#allocation4 + $0xb8] sm:$0xff]
        %v629 = vld [vmem:[#allocation4 + $0xc0] sm:$0xff]
        %v630 = vld [vmem:[#allocation4 + $0xc8] sm:$0xff]
        %v631 = vld [vmem:[#allocation4 + $0xd0] sm:$0xff]
        %v632 = vld [vmem:[#allocation4 + $0xd8] sm:$0xff]
        %v633 = vld [vmem:[#allocation4 + $0xe0] sm:$0xff]
        %v634 = vld [vmem:[#allocation4 + $0xe8] sm:$0xff]
        %v635 = vld [vmem:[#allocation4 + $0xf0] sm:$0xff]
        %v636 = vld [vmem:[#allocation4 + $0xf8] sm:$0xff]
        %v637 = vld [vmem:[#allocation4 + $0x100] sm:$0xff]
        %v638 = vld [vmem:[#allocation4 + $0x108] sm:$0xff]
        %v639 = vld [vmem:[#allocation4 + $0x110] sm:$0xff]
        %v640 = vld [vmem:[#allocation4 + $0x118] sm:$0xff]
        %v641 = vld [vmem:[#allocation4 + $0x120] sm:$0xff]
        %v642 = vld [vmem:[#allocation4 + $0x128] sm:$0xff]
        %v643 = vld [vmem:[#allocation4 + $0x130] sm:$0xff]
        %v644 = vld [vmem:[#allocation4 + $0x138] sm:$0xff]
        %v645 = vld [vmem:[#allocation4 + $0x140] sm:$0xff]
        %v646 = vld [vmem:[#allocation4 + $0x148] sm:$0xff]
        %v647 = vld [vmem:[#allocation4 + $0x150] sm:$0xff]
        %v648 = vld [vmem:[#allocation4 + $0x158] sm:$0xff]
        %v649 = vld [vmem:[#allocation4 + $0x160] sm:$0xff]
        %v650 = vld [vmem:[#allocation4 + $0x168] sm:$0xff]
        %v651 = vld [vmem:[#allocation4 + $0x170] sm:$0xff]
        %v652 = vld [vmem:[#allocation4 + $0x178] sm:$0xff]
        %v653 = vld [vmem:[#allocation4 + $0x180] sm:$0xff]
        %v654 = vld [vmem:[#allocation4 + $0x188] sm:$0xff]
        %v655 = vld [vmem:[#allocation4 + $0x190] sm:$0xff]
        %v656 = vld [vmem:[#allocation4 + $0x198] sm:$0xff]
        %v657 = vld [vmem:[#allocation4 + $0x1a0] sm:$0xff]
        %v658 = vld [vmem:[#allocation4 + $0x1a8] sm:$0xff]
        %v659 = vld [vmem:[#allocation4 + $0x1b0] sm:$0xff]
        %v660 = vld [vmem:[#allocation4 + $0x1b8] sm:$0xff]
        %v661 = vld [vmem:[#allocation4 + $0x1c0] sm:$0xff]
        %v662 = vld [vmem:[#allocation4 + $0x1c8] sm:$0xff]
        %v663 = vld [vmem:[#allocation4 + $0x1d0] sm:$0xff]
        %v664 = vld [vmem:[#allocation4 + $0x1d8] sm:$0xff]
        %v665 = vld [vmem:[#allocation4 + $0x1e0] sm:$0xff]
        %v666 = vld [vmem:[#allocation4 + $0x1e8] sm:$0xff]
        %v667 = vld [vmem:[#allocation4 + $0x1f0] sm:$0xff]
        %v668 = vld [vmem:[#allocation4 + $0x1f8] sm:$0xff]
        %v669 = vld [vmem:[%s4] sm:$0x3]
        %v671 = vlaneseq
        %v672 = vshrl.u32 %v671, 7
        %v673 = vsub.s32 0, %v672
        %v674 = vrot.slane %v669, %v673
        %v675 = vlaneseq
        %v676 = vshrl.u32 %v675, 7
        %v677 = vsub.s32 1, %v676
        %v678 = vrot.slane %v669, %v677
        %v745 = vunpack.c.l.b16 %v605
        %v746 = vunpack.c.h.b16 %v605
        %v747 = vunpack.c.l.b16 %v606
        %v748 = vunpack.c.h.b16 %v606
        %v749 = vunpack.c.l.b16 %v607
        %v750 = vunpack.c.h.b16 %v607
        %v751 = vunpack.c.l.b16 %v608
        %v752 = vunpack.c.h.b16 %v608
        %v753 = vunpack.c.l.b16 %v609
        %v754 = vunpack.c.h.b16 %v609
        %v755 = vunpack.c.l.b16 %v610
        %v756 = vunpack.c.h.b16 %v610
        %v757 = vunpack.c.l.b16 %v611
        %v758 = vunpack.c.h.b16 %v611
        %v759 = vunpack.c.l.b16 %v612
        %v760 = vunpack.c.h.b16 %v612
        %v761 = vunpack.c.l.b16 %v613
        %v762 = vunpack.c.h.b16 %v613
        %v763 = vunpack.c.l.b16 %v614
        %v764 = vunpack.c.h.b16 %v614
        %v765 = vunpack.c.l.b16 %v615
        %v766 = vunpack.c.h.b16 %v615
        %v767 = vunpack.c.l.b16 %v616
        %v768 = vunpack.c.h.b16 %v616
        %v769 = vunpack.c.l.b16 %v617
        %v770 = vunpack.c.h.b16 %v617
        %v771 = vunpack.c.l.b16 %v618
        %v772 = vunpack.c.h.b16 %v618
        %v773 = vunpack.c.l.b16 %v619
        %v774 = vunpack.c.h.b16 %v619
        %v775 = vunpack.c.l.b16 %v620
        %v776 = vunpack.c.h.b16 %v620
        %v777 = vunpack.c.l.b16 %v621
        %v778 = vunpack.c.h.b16 %v621
        %v779 = vunpack.c.l.b16 %v622
        %v780 = vunpack.c.h.b16 %v622
        %v781 = vunpack.c.l.b16 %v623
        %v782 = vunpack.c.h.b16 %v623
        %v783 = vunpack.c.l.b16 %v624
        %v784 = vunpack.c.h.b16 %v624
        %v785 = vunpack.c.l.b16 %v625
        %v786 = vunpack.c.h.b16 %v625
        %v787 = vunpack.c.l.b16 %v626
        %v788 = vunpack.c.h.b16 %v626
        %v789 = vunpack.c.l.b16 %v627
        %v790 = vunpack.c.h.b16 %v627
        %v791 = vunpack.c.l.b16 %v628
        %v792 = vunpack.c.h.b16 %v628
        %v793 = vunpack.c.l.b16 %v629
        %v794 = vunpack.c.h.b16 %v629
        %v795 = vunpack.c.l.b16 %v630
        %v796 = vunpack.c.h.b16 %v630
        %v797 = vunpack.c.l.b16 %v631
        %v798 = vunpack.c.h.b16 %v631
        %v799 = vunpack.c.l.b16 %v632
        %v800 = vunpack.c.h.b16 %v632
        %v801 = vunpack.c.l.b16 %v633
        %v802 = vunpack.c.h.b16 %v633
        %v803 = vunpack.c.l.b16 %v634
        %v804 = vunpack.c.h.b16 %v634
        %v805 = vunpack.c.l.b16 %v635
        %v806 = vunpack.c.h.b16 %v635
        %v807 = vunpack.c.l.b16 %v636
        %v808 = vunpack.c.h.b16 %v636
        %v809 = vunpack.c.l.b16 %v637
        %v810 = vunpack.c.h.b16 %v637
        %v811 = vunpack.c.l.b16 %v638
        %v812 = vunpack.c.h.b16 %v638
        %v813 = vunpack.c.l.b16 %v639
        %v814 = vunpack.c.h.b16 %v639
        %v815 = vunpack.c.l.b16 %v640
        %v816 = vunpack.c.h.b16 %v640
        %v817 = vunpack.c.l.b16 %v641
        %v818 = vunpack.c.h.b16 %v641
        %v819 = vunpack.c.l.b16 %v642
        %v820 = vunpack.c.h.b16 %v642
        %v821 = vunpack.c.l.b16 %v643
        %v822 = vunpack.c.h.b16 %v643
        %v823 = vunpack.c.l.b16 %v644
        %v824 = vunpack.c.h.b16 %v644
        %v825 = vunpack.c.l.b16 %v645
        %v826 = vunpack.c.h.b16 %v645
        %v827 = vunpack.c.l.b16 %v646
        %v828 = vunpack.c.h.b16 %v646
        %v829 = vunpack.c.l.b16 %v647
        %v830 = vunpack.c.h.b16 %v647
        %v831 = vunpack.c.l.b16 %v648
        %v832 = vunpack.c.h.b16 %v648
        %v833 = vunpack.c.l.b16 %v649
        %v834 = vunpack.c.h.b16 %v649
        %v835 = vunpack.c.l.b16 %v650
        %v836 = vunpack.c.h.b16 %v650
        %v837 = vunpack.c.l.b16 %v651
        %v838 = vunpack.c.h.b16 %v651
        %v839 = vunpack.c.l.b16 %v652
        %v840 = vunpack.c.h.b16 %v652
        %v841 = vunpack.c.l.b16 %v653
        %v842 = vunpack.c.h.b16 %v653
        %v843 = vunpack.c.l.b16 %v654
        %v844 = vunpack.c.h.b16 %v654
        %v845 = vunpack.c.l.b16 %v655
        %v846 = vunpack.c.h.b16 %v655
        %v847 = vunpack.c.l.b16 %v656
        %v848 = vunpack.c.h.b16 %v656
        %v849 = vunpack.c.l.b16 %v657
        %v850 = vunpack.c.h.b16 %v657
        %v851 = vunpack.c.l.b16 %v658
        %v852 = vunpack.c.h.b16 %v658
        %v853 = vunpack.c.l.b16 %v659
        %v854 = vunpack.c.h.b16 %v659
        %v855 = vunpack.c.l.b16 %v660
        %v856 = vunpack.c.h.b16 %v660
        %v857 = vunpack.c.l.b16 %v661
        %v858 = vunpack.c.h.b16 %v661
        %v859 = vunpack.c.l.b16 %v662
        %v860 = vunpack.c.h.b16 %v662
        %v861 = vunpack.c.l.b16 %v663
        %v862 = vunpack.c.h.b16 %v663
        %v863 = vunpack.c.l.b16 %v664
        %v864 = vunpack.c.h.b16 %v664
        %v865 = vunpack.c.l.b16 %v665
        %v866 = vunpack.c.h.b16 %v665
        %v867 = vunpack.c.l.b16 %v666
        %v868 = vunpack.c.h.b16 %v666
        %v869 = vunpack.c.l.b16 %v667
        %v870 = vunpack.c.h.b16 %v667
        %v871 = vunpack.c.l.b16 %v668
        %v872 = vunpack.c.h.b16 %v668
        %v873 = vpack.c.b16 %v747, %v745
        %v874 = vpack.c.b16 %v748, %v746
        %v875 = vpack.c.b16 %v751, %v749
        %v876 = vpack.c.b16 %v752, %v750
        %v877 = vpack.c.b16 %v755, %v753
        %v878 = vpack.c.b16 %v756, %v754
        %v879 = vpack.c.b16 %v759, %v757
        %v880 = vpack.c.b16 %v760, %v758
        %v881 = vpack.c.b16 %v763, %v761
        %v882 = vpack.c.b16 %v764, %v762
        %v883 = vpack.c.b16 %v767, %v765
        %v884 = vpack.c.b16 %v768, %v766
        %v885 = vpack.c.b16 %v771, %v769
        %v886 = vpack.c.b16 %v772, %v770
        %v887 = vpack.c.b16 %v775, %v773
        %v888 = vpack.c.b16 %v776, %v774
        %v889 = vpack.c.b16 %v779, %v777
        %v890 = vpack.c.b16 %v780, %v778
        %v891 = vpack.c.b16 %v783, %v781
        %v892 = vpack.c.b16 %v784, %v782
        %v893 = vpack.c.b16 %v787, %v785
        %v894 = vpack.c.b16 %v788, %v786
        %v895 = vpack.c.b16 %v791, %v789
        %v896 = vpack.c.b16 %v792, %v790
        %v897 = vpack.c.b16 %v795, %v793
        %v898 = vpack.c.b16 %v796, %v794
        %v899 = vpack.c.b16 %v799, %v797
        %v900 = vpack.c.b16 %v800, %v798
        %v901 = vpack.c.b16 %v803, %v801
        %v902 = vpack.c.b16 %v804, %v802
        %v903 = vpack.c.b16 %v807, %v805
        %v904 = vpack.c.b16 %v808, %v806
        %v905 = vpack.c.b16 %v811, %v809
        %v906 = vpack.c.b16 %v812, %v810
        %v907 = vpack.c.b16 %v815, %v813
        %v908 = vpack.c.b16 %v816, %v814
        %v909 = vpack.c.b16 %v819, %v817
        %v910 = vpack.c.b16 %v820, %v818
        %v911 = vpack.c.b16 %v823, %v821
        %v912 = vpack.c.b16 %v824, %v822
        %v913 = vpack.c.b16 %v827, %v825
        %v914 = vpack.c.b16 %v828, %v826
        %v915 = vpack.c.b16 %v831, %v829
        %v916 = vpack.c.b16 %v832, %v830
        %v917 = vpack.c.b16 %v835, %v833
        %v918 = vpack.c.b16 %v836, %v834
        %v919 = vpack.c.b16 %v839, %v837
        %v920 = vpack.c.b16 %v840, %v838
        %v921 = vpack.c.b16 %v843, %v841
        %v922 = vpack.c.b16 %v844, %v842
        %v923 = vpack.c.b16 %v847, %v845
        %v924 = vpack.c.b16 %v848, %v846
        %v925 = vpack.c.b16 %v851, %v849
        %v926 = vpack.c.b16 %v852, %v850
        %v927 = vpack.c.b16 %v855, %v853
        %v928 = vpack.c.b16 %v856, %v854
        %v929 = vpack.c.b16 %v859, %v857
        %v930 = vpack.c.b16 %v860, %v858
        %v931 = vpack.c.b16 %v863, %v861
        %v932 = vpack.c.b16 %v864, %v862
        %v933 = vpack.c.b16 %v867, %v865
        %v934 = vpack.c.b16 %v868, %v866
        %v935 = vpack.c.b16 %v871, %v869
        %v936 = vpack.c.b16 %v872, %v870
        %1001 = vmatprep.subr.bf16.mxu0 %v888
        %1002 = vmatpush1.bf16.msra.mxu0 %v887
        %1003 = vmatprep.subr.bf16.mxu0 %v886
        %1004 = vmatpush1.bf16.msra.mxu0 %v885
        %1005 = vmatprep.subr.bf16.mxu0 %v884
        %1006 = vmatpush1.bf16.msra.mxu0 %v883
        %1007 = vmatprep.subr.bf16.mxu0 %v882
        %1008 = vmatpush1.bf16.msra.mxu0 %v881
        %1009 = vmatprep.subr.bf16.mxu0 %v880
        %1010 = vmatpush1.bf16.msra.mxu0 %v879
        %1011 = vmatprep.subr.bf16.mxu0 %v878
        %1012 = vmatpush1.bf16.msra.mxu0 %v877
        %1013 = vmatprep.subr.bf16.mxu0 %v876
        %1014 = vmatpush1.bf16.msra.mxu0 %v875
        %1015 = vmatprep.subr.bf16.mxu0 %v874
        %1016 = vmatpush1.bf16.msra.mxu0 %v873
        %1017 = vmatprep.subr.bf16.mxu0 %v904
        %1018 = vmatpush2.bf16.msra.mxu0 %v903
        %1019 = vmatprep.subr.bf16.mxu0 %v902
        %1020 = vmatpush2.bf16.msra.mxu0 %v901
        %1021 = vmatprep.subr.bf16.mxu0 %v900
        %1022 = vmatpush2.bf16.msra.mxu0 %v899
        %1023 = vmatprep.subr.bf16.mxu0 %v898
        %1024 = vmatpush2.bf16.msra.mxu0 %v897
        %1025 = vmatprep.subr.bf16.mxu0 %v896
        %1026 = vmatpush2.bf16.msra.mxu0 %v895
        %1027 = vmatprep.subr.bf16.mxu0 %v894
        %1028 = vmatpush2.bf16.msra.mxu0 %v893
        %1029 = vmatprep.subr.bf16.mxu0 %v892
        %1030 = vmatpush2.bf16.msra.mxu0 %v891
        %1031 = vmatprep.subr.bf16.mxu0 %v890
        %1032 = vmatpush2.bf16.msra.mxu0 %v889
        %1033 = vmatprep.mubr.bf16.mxu0 %v598
        %1034 = vmatmul.mubr.bf16.gmra.mxu0 %v597
        %v1035 = vpop.f32.mrf.mxu0
        %v1036 = vadd.f32 %v674, %v1035
        %v1037 = vpop.f32.mrf.mxu0
        %v1038 = vadd.f32 %v678, %v1037
        %v1039 = vpop.f32.mrf.mxu0
        %v1040 = vadd.f32 %v674, %v1039
        %v1041 = vpop.f32.mrf.mxu0
        %v1042 = vadd.f32 %v678, %v1041
        %1043 = vmatprep.mubr.bf16.mxu0 %v602
        %1044 = vmatmul.mubr.bf16.gmra.mxu0 %v601
        %v1045 = vpop.f32.mrf.mxu0
        %v1046 = vadd.f32 %v674, %v1045
        %v1047 = vpop.f32.mrf.mxu0
        %v1048 = vadd.f32 %v678, %v1047
        %v1049 = vpop.f32.mrf.mxu0
        %v1050 = vadd.f32 %v674, %v1049
        %v1051 = vpop.f32.mrf.mxu0
        %v1052 = vadd.f32 %v678, %v1051
        %1053 = vdwg.mxu0
        %1054 = vmatprep.subr.bf16.mxu0 %v920
        %1055 = vmatpush1.bf16.msra.mxu0 %v919
        %1056 = vmatprep.subr.bf16.mxu0 %v918
        %1057 = vmatpush1.bf16.msra.mxu0 %v917
        %1058 = vmatprep.subr.bf16.mxu0 %v916
        %1059 = vmatpush1.bf16.msra.mxu0 %v915
        %1060 = vmatprep.subr.bf16.mxu0 %v914
        %1061 = vmatpush1.bf16.msra.mxu0 %v913
        %1062 = vmatprep.subr.bf16.mxu0 %v912
        %1063 = vmatpush1.bf16.msra.mxu0 %v911
        %1064 = vmatprep.subr.bf16.mxu0 %v910
        %1065 = vmatpush1.bf16.msra.mxu0 %v909
        %1066 = vmatprep.subr.bf16.mxu0 %v908
        %1067 = vmatpush1.bf16.msra.mxu0 %v907
        %1068 = vmatprep.subr.bf16.mxu0 %v906
        %1069 = vmatpush1.bf16.msra.mxu0 %v905
        %1070 = vmatprep.subr.bf16.mxu0 %v936
        %1071 = vmatpush2.bf16.msra.mxu0 %v935
        %1072 = vmatprep.subr.bf16.mxu0 %v934
        %1073 = vmatpush2.bf16.msra.mxu0 %v933
        %1074 = vmatprep.subr.bf16.mxu0 %v932
        %1075 = vmatpush2.bf16.msra.mxu0 %v931
        %1076 = vmatprep.subr.bf16.mxu0 %v930
        %1077 = vmatpush2.bf16.msra.mxu0 %v929
        %1078 = vmatprep.subr.bf16.mxu0 %v928
        %1079 = vmatpush2.bf16.msra.mxu0 %v927
        %1080 = vmatprep.subr.bf16.mxu0 %v926
        %1081 = vmatpush2.bf16.msra.mxu0 %v925
        %1082 = vmatprep.subr.bf16.mxu0 %v924
        %1083 = vmatpush2.bf16.msra.mxu0 %v923
        %1084 = vmatprep.subr.bf16.mxu0 %v922
        %1085 = vmatpush2.bf16.msra.mxu0 %v921
        %1086 = vmatprep.mubr.bf16.mxu0 %v600
        %1087 = vmatmul.mubr.bf16.gmra.mxu0 %v599
        %v1088 = vpop.f32.mrf.mxu0
        %v1089 = vadd.f32 %v1036, %v1088
        %v1090 = vpop.f32.mrf.mxu0
        %v1091 = vadd.f32 %v1038, %v1090
        %v1092 = vpop.f32.mrf.mxu0
        %v1093 = vadd.f32 %v1040, %v1092
        %v1094 = vpop.f32.mrf.mxu0
        %v1095 = vadd.f32 %v1042, %v1094
        %1096 = vmatprep.mubr.bf16.mxu0 %v604
        %1097 = vmatmul.mubr.bf16.gmra.mxu0 %v603
        %v1098 = vpop.f32.mrf.mxu0
        %v1099 = vadd.f32 %v1046, %v1098
        %v1100 = vpop.f32.mrf.mxu0
        %v1101 = vadd.f32 %v1048, %v1100
        %v1102 = vpop.f32.mrf.mxu0
        %v1103 = vadd.f32 %v1050, %v1102
        %v1104 = vpop.f32.mrf.mxu0
        %v1105 = vadd.f32 %v1052, %v1104
        %1106 = vdwg.mxu0
        %v1107 = vmax.f32 %v1089, 0.0
        %v1108 = vmax.f32 %v1091, 0.0
        %v1109 = vmax.f32 %v1093, 0.0
        %v1110 = vmax.f32 %v1095, 0.0
        %v1111 = vmax.f32 %v1099, 0.0
        %v1112 = vmax.f32 %v1101, 0.0
        %v1113 = vmax.f32 %v1103, 0.0
        %v1114 = vmax.f32 %v1105, 0.0
        %v1115 = vpack.c.bf16 %v1109, %v1107
        %v1116 = vpack.c.bf16 %v1110, %v1108
        %v1117 = vpack.c.bf16 %v1113, %v1111
        %v1118 = vpack.c.bf16 %v1114, %v1112
        %v1119 = vld [vmem:[%s5] sm:$0xf]
        %v1120 = vld [vmem:[%s5 + $0x4] sm:$0xf]
        %v1121 = vld [vmem:[%s5 + $0x8] sm:$0xf]
        %v1122 = vld [vmem:[%s5 + $0xc] sm:$0xf]
        %v1123 = vld [vmem:[%s5 + $0x10] sm:$0xf]
        %v1124 = vld [vmem:[%s5 + $0x14] sm:$0xf]
        %v1125 = vld [vmem:[%s5 + $0x18] sm:$0xf]
        %v1126 = vld [vmem:[%s5 + $0x1c] sm:$0xf]
        %v1127 = vld [vmem:[%s5 + $0x20] sm:$0xf]
        %v1128 = vld [vmem:[%s5 + $0x24] sm:$0xf]
        %v1129 = vld [vmem:[%s5 + $0x28] sm:$0xf]
        %v1130 = vld [vmem:[%s5 + $0x2c] sm:$0xf]
        %v1131 = vld [vmem:[%s5 + $0x30] sm:$0xf]
        %v1132 = vld [vmem:[%s5 + $0x34] sm:$0xf]
        %v1133 = vld [vmem:[%s5 + $0x38] sm:$0xf]
        %v1134 = vld [vmem:[%s5 + $0x3c] sm:$0xf]
        %v1135 = vld [vmem:[%s5 + $0x40] sm:$0xf]
        %v1136 = vld [vmem:[%s5 + $0x44] sm:$0xf]
        %v1137 = vld [vmem:[%s5 + $0x48] sm:$0xf]
        %v1138 = vld [vmem:[%s5 + $0x4c] sm:$0xf]
        %v1139 = vld [vmem:[%s5 + $0x50] sm:$0xf]
        %v1140 = vld [vmem:[%s5 + $0x54] sm:$0xf]
        %v1141 = vld [vmem:[%s5 + $0x58] sm:$0xf]
        %v1142 = vld [vmem:[%s5 + $0x5c] sm:$0xf]
        %v1143 = vld [vmem:[%s5 + $0x60] sm:$0xf]
        %v1144 = vld [vmem:[%s5 + $0x64] sm:$0xf]
        %v1145 = vld [vmem:[%s5 + $0x68] sm:$0xf]
        %v1146 = vld [vmem:[%s5 + $0x6c] sm:$0xf]
        %v1147 = vld [vmem:[%s5 + $0x70] sm:$0xf]
        %v1148 = vld [vmem:[%s5 + $0x74] sm:$0xf]
        %v1149 = vld [vmem:[%s5 + $0x78] sm:$0xf]
        %v1150 = vld [vmem:[%s5 + $0x7c] sm:$0xf]
        %v1151 = vld [vmem:[%s6] sm:$0x1]
        %v1153 = vlaneseq
        %v1154 = vshrl.u32 %v1153, 7
        %v1155 = vsub.s32 0, %v1154
        %v1156 = vrot.slane %v1151, %v1155
        %v1190 = vunpack.c.l.b16 %v1119
        %v1191 = vunpack.c.l.b16 %v1120
        %v1192 = vunpack.c.l.b16 %v1121
        %v1193 = vunpack.c.l.b16 %v1122
        %v1194 = vunpack.c.l.b16 %v1123
        %v1195 = vunpack.c.l.b16 %v1124
        %v1196 = vunpack.c.l.b16 %v1125
        %v1197 = vunpack.c.l.b16 %v1126
        %v1198 = vunpack.c.l.b16 %v1127
        %v1199 = vunpack.c.l.b16 %v1128
        %v1200 = vunpack.c.l.b16 %v1129
        %v1201 = vunpack.c.l.b16 %v1130
        %v1202 = vunpack.c.l.b16 %v1131
        %v1203 = vunpack.c.l.b16 %v1132
        %v1204 = vunpack.c.l.b16 %v1133
        %v1205 = vunpack.c.l.b16 %v1134
        %v1206 = vunpack.c.l.b16 %v1135
        %v1207 = vunpack.c.l.b16 %v1136
        %v1208 = vunpack.c.l.b16 %v1137
        %v1209 = vunpack.c.l.b16 %v1138
        %v1210 = vunpack.c.l.b16 %v1139
        %v1211 = vunpack.c.l.b16 %v1140
        %v1212 = vunpack.c.l.b16 %v1141
        %v1213 = vunpack.c.l.b16 %v1142
        %v1214 = vunpack.c.l.b16 %v1143
        %v1215 = vunpack.c.l.b16 %v1144
        %v1216 = vunpack.c.l.b16 %v1145
        %v1217 = vunpack.c.l.b16 %v1146
        %v1218 = vunpack.c.l.b16 %v1147
        %v1219 = vunpack.c.l.b16 %v1148
        %v1220 = vunpack.c.l.b16 %v1149
        %v1221 = vunpack.c.l.b16 %v1150
        %v1222 = vpack.c.b16 %v1191, %v1190
        %v1223 = vpack.c.b16 %v1193, %v1192
        %v1224 = vpack.c.b16 %v1195, %v1194
        %v1225 = vpack.c.b16 %v1197, %v1196
        %v1226 = vpack.c.b16 %v1199, %v1198
        %v1227 = vpack.c.b16 %v1201, %v1200
        %v1228 = vpack.c.b16 %v1203, %v1202
        %v1229 = vpack.c.b16 %v1205, %v1204
        %v1230 = vpack.c.b16 %v1207, %v1206
        %v1231 = vpack.c.b16 %v1209, %v1208
        %v1232 = vpack.c.b16 %v1211, %v1210
        %v1233 = vpack.c.b16 %v1213, %v1212
        %v1234 = vpack.c.b16 %v1215, %v1214
        %v1235 = vpack.c.b16 %v1217, %v1216
        %v1236 = vpack.c.b16 %v1219, %v1218
        %v1237 = vpack.c.b16 %v1221, %v1220
        %1254 = vmatprep.subr.bf16.mxu0 0
        %1255 = vmatpush1.bf16.msra.mxu0 %v1229
        %1256 = vmatprep.subr.bf16.mxu0 0
        %1257 = vmatpush1.bf16.msra.mxu0 %v1228
        %1258 = vmatprep.subr.bf16.mxu0 0
        %1259 = vmatpush1.bf16.msra.mxu0 %v1227
        %1260 = vmatprep.subr.bf16.mxu0 0
        %1261 = vmatpush1.bf16.msra.mxu0 %v1226
        %1262 = vmatprep.subr.bf16.mxu0 0
        %1263 = vmatpush1.bf16.msra.mxu0 %v1225
        %1264 = vmatprep.subr.bf16.mxu0 0
        %1265 = vmatpush1.bf16.msra.mxu0 %v1224
        %1266 = vmatprep.subr.bf16.mxu0 0
        %1267 = vmatpush1.bf16.msra.mxu0 %v1223
        %1268 = vmatprep.subr.bf16.mxu0 0
        %1269 = vmatpush1.bf16.msra.mxu0 %v1222
        %1270 = vmatprep.subr.bf16.mxu0 0
        %1271 = vmatpush2.bf16.msra.mxu0 %v1237
        %1272 = vmatprep.subr.bf16.mxu0 0
        %1273 = vmatpush2.bf16.msra.mxu0 %v1236
        %1274 = vmatprep.subr.bf16.mxu0 0
        %1275 = vmatpush2.bf16.msra.mxu0 %v1235
        %1276 = vmatprep.subr.bf16.mxu0 0
        %1277 = vmatpush2.bf16.msra.mxu0 %v1234
        %1278 = vmatprep.subr.bf16.mxu0 0
        %1279 = vmatpush2.bf16.msra.mxu0 %v1233
        %1280 = vmatprep.subr.bf16.mxu0 0
        %1281 = vmatpush2.bf16.msra.mxu0 %v1232
        %1282 = vmatprep.subr.bf16.mxu0 0
        %1283 = vmatpush2.bf16.msra.mxu0 %v1231
        %1284 = vmatprep.subr.bf16.mxu0 0
        %1285 = vmatpush2.bf16.msra.mxu0 %v1230
        %1286 = vmatprep.mubr.bf16.mxu0 %v1116
        %1287 = vmatmul.mubr.bf16.gmra.mxu0 %v1115
        %v1288 = vpop.f32.mrf.mxu0
        %v1289 = vadd.f32 %v1156, %v1288
        %v1290 = vpop.f32.mrf.mxu0
        %v1291 = vpop.f32.mrf.mxu0
        %v1292 = vadd.f32 %v1156, %v1291
        %v1293 = vpop.f32.mrf.mxu0
        %1294 = vmatprep.mubr.bf16.mxu0 %v1118
        %1295 = vmatmul.mubr.bf16.gmra.mxu0 %v1117
        %v1296 = vpop.f32.mrf.mxu0
        %v1297 = vadd.f32 %v1156, %v1296
        %v1298 = vpop.f32.mrf.mxu0
        %v1299 = vpop.f32.mrf.mxu0
        %v1300 = vadd.f32 %v1156, %v1299
        %v1301 = vpop.f32.mrf.mxu0
        %1302 = vdwg.mxu0
        %v1303 = vmax.f32 %v1289, 0.0
        %v1304 = vmax.f32 %v1292, 0.0
        %v1305 = vmax.f32 %v1297, 0.0
        %v1306 = vmax.f32 %v1300, 0.0
        %v1307 = vpack.c.bf16 %v1304, %v1303
        %v1308 = vpack.c.bf16 %v1306, %v1305
        %v1309 = vld [vmem:[%s7] sm:$0xf]
        %v1310 = vld [vmem:[%s7 + $0x4] sm:$0xf]
        %v1311 = vld [vmem:[%s7 + $0x8] sm:$0xf]
        %v1312 = vld [vmem:[%s7 + $0xc] sm:$0xf]
        %v1313 = vld [vmem:[%s7 + $0x10] sm:$0xf]
        %v1314 = vld [vmem:[%s7 + $0x14] sm:$0xf]
        %v1315 = vld [vmem:[%s7 + $0x18] sm:$0xf]
        %v1316 = vld [vmem:[%s7 + $0x1c] sm:$0xf]
        %v1317 = vld [vmem:[%s7 + $0x20] sm:$0xf]
        %v1318 = vld [vmem:[%s7 + $0x24] sm:$0xf]
        %v1319 = vld [vmem:[%s7 + $0x28] sm:$0xf]
        %v1320 = vld [vmem:[%s7 + $0x2c] sm:$0xf]
        %v1321 = vld [vmem:[%s7 + $0x30] sm:$0xf]
        %v1322 = vld [vmem:[%s7 + $0x34] sm:$0xf]
        %v1323 = vld [vmem:[%s7 + $0x38] sm:$0xf]
        %v1324 = vld [vmem:[%s7 + $0x3c] sm:$0xf]
        %v1325 = vld [vmem:[%s8] sm:$0x1]
        %v1327 = vlaneseq
        %v1328 = vshrl.u32 %v1327, 7
        %v1329 = vsub.s32 0, %v1328
        %v1330 = vrot.slane %v1325, %v1329
        %v1348 = vunpack.c.l.b16 %v1309
        %v1349 = vunpack.c.l.b16 %v1310
        %v1350 = vunpack.c.l.b16 %v1311
        %v1351 = vunpack.c.l.b16 %v1312
        %v1352 = vunpack.c.l.b16 %v1313
        %v1353 = vunpack.c.l.b16 %v1314
        %v1354 = vunpack.c.l.b16 %v1315
        %v1355 = vunpack.c.l.b16 %v1316
        %v1356 = vunpack.c.l.b16 %v1317
        %v1357 = vunpack.c.l.b16 %v1318
        %v1358 = vunpack.c.l.b16 %v1319
        %v1359 = vunpack.c.l.b16 %v1320
        %v1360 = vunpack.c.l.b16 %v1321
        %v1361 = vunpack.c.l.b16 %v1322
        %v1362 = vunpack.c.l.b16 %v1323
        %v1363 = vunpack.c.l.b16 %v1324
        %v1364 = vpack.c.b16 %v1349, %v1348
        %v1365 = vpack.c.b16 %v1351, %v1350
        %v1366 = vpack.c.b16 %v1353, %v1352
        %v1367 = vpack.c.b16 %v1355, %v1354
        %v1368 = vpack.c.b16 %v1357, %v1356
        %v1369 = vpack.c.b16 %v1359, %v1358
        %v1370 = vpack.c.b16 %v1361, %v1360
        %v1371 = vpack.c.b16 %v1363, %v1362
        %1380 = vmatprep.subr.bf16.mxu0 0
        %1381 = vmatpush1.bf16.msra.mxu0 %v1371
        %1382 = vmatprep.subr.bf16.mxu0 0
        %1383 = vmatpush1.bf16.msra.mxu0 %v1370
        %1384 = vmatprep.subr.bf16.mxu0 0
        %1385 = vmatpush1.bf16.msra.mxu0 %v1369
        %1386 = vmatprep.subr.bf16.mxu0 0
        %1387 = vmatpush1.bf16.msra.mxu0 %v1368
        %1388 = vmatprep.subr.bf16.mxu0 0
        %1389 = vmatpush1.bf16.msra.mxu0 %v1367
        %1390 = vmatprep.subr.bf16.mxu0 0
        %1391 = vmatpush1.bf16.msra.mxu0 %v1366
        %1392 = vmatprep.subr.bf16.mxu0 0
        %1393 = vmatpush1.bf16.msra.mxu0 %v1365
        %1394 = vmatprep.subr.bf16.mxu0 0
        %1395 = vmatpush1.bf16.msra.mxu0 %v1364
        %1396 = vmatprep.subr.bf16.mxu0 0
        %1397 = vmatpush2.bf16.msra.mxu0 0
        %1398 = vmatprep.subr.bf16.mxu0 0
        %1399 = vmatpush2.bf16.msra.mxu0 0
        %1400 = vmatprep.subr.bf16.mxu0 0
        %1401 = vmatpush2.bf16.msra.mxu0 0
        %1402 = vmatprep.subr.bf16.mxu0 0
        %1403 = vmatpush2.bf16.msra.mxu0 0
        %1404 = vmatprep.subr.bf16.mxu0 0
        %1405 = vmatpush2.bf16.msra.mxu0 0
        %1406 = vmatprep.subr.bf16.mxu0 0
        %1407 = vmatpush2.bf16.msra.mxu0 0
        %1408 = vmatprep.subr.bf16.mxu0 0
        %1409 = vmatpush2.bf16.msra.mxu0 0
        %1410 = vmatprep.subr.bf16.mxu0 0
        %1411 = vmatpush2.bf16.msra.mxu0 0
        %1412 = vmatprep.mubr.bf16.mxu0 0
        %1413 = vmatmul.mubr.bf16.gmra.mxu0 %v1307
        %v1414 = vpop.f32.mrf.mxu0
        %v1415 = vadd.f32 %v1330, %v1414
        %v1416 = vpop.f32.mrf.mxu0
        %v1417 = vpop.f32.mrf.mxu0
        %v1418 = vadd.f32 %v1330, %v1417
        %v1419 = vpop.f32.mrf.mxu0
        %1420 = vmatprep.mubr.bf16.mxu0 0
        %1421 = vmatmul.mubr.bf16.gmra.mxu0 %v1308
        %v1422 = vpop.f32.mrf.mxu0
        %v1423 = vadd.f32 %v1330, %v1422
        %v1424 = vpop.f32.mrf.mxu0
        %v1425 = vpop.f32.mrf.mxu0
        %v1426 = vadd.f32 %v1330, %v1425
        %v1427 = vpop.f32.mrf.mxu0
        %1428 = vdwg.mxu0
        %vm1429 = vcmask 31744
        %1430 = vst.msk [vmem:[%s364] sm:$0xff] %vm1429, %v1415
        %1431 = vst.msk [vmem:[%s364 + $0x8] sm:$0xff] %vm1429, %v1418
        %1432 = vst.msk [vmem:[%s364 + $0x10] sm:$0xff] %vm1429, %v1423
        %1433 = vst.msk [vmem:[%s364 + $0x18] sm:$0xff] %vm1429, %v1426
        %s1434 = smul.u32 4, %s22
        %p1435 = scmp.lt.s32.totalorder %s1434, 7
        %s1436 = scalar_select %p1435, %s1434, 7
        %s1437 = smul.addr %s1436, 8
        %s1438 = scalar_lea.vmem %s9, %s1437
        // Predicated region
        $region65: #{keypoint_mlp_forward.1} parent=55 // pred_check
          %p1439 = pneg %p234
        $region66: #{keypoint_mlp_forward.1} parent=55 // pred_check_branch
          %1441 = sbr.rel (%p1439) target = $region68
        $region67: #{keypoint_mlp_forward.1} parent=55 // pred_region
          %s1442 = smul.u32 4, %s22
        $region68: #{keypoint_mlp_forward.1} parent=55 // pred_fallthru
          _
      $region56: #{keypoint_mlp_forward.1} parent=5 // pred_fallthru
        _
      %p1443 = scmp.le.s32.totalorder 2, %s17
      // Predicated region
      $region69: #{keypoint_mlp_forward.1} parent=5 // pred_check
        %p1444 = pneg %p1443
      $region70: #{keypoint_mlp_forward.1} parent=5 // pred_check_branch
        %1446 = sbr.rel (%p1444) target = $region72
      $region71: #{keypoint_mlp_forward.1} parent=5 // pred_region
        %s1447 = ssub.s32 %s17, 2
        // Predicated region
        $region73: #{keypoint_mlp_forward.1} parent=71 // pred_check
          %p1448 = pneg %p240
        $region74: #{keypoint_mlp_forward.1} parent=71 // pred_check_branch
          %1450 = sbr.rel (%p1448) target = $region76
        $region75: #{keypoint_mlp_forward.1} parent=71 // pred_region
          %s1451 = smul.u32 4, %s23
          %p1452 = scmp.lt.s32.totalorder %s1451, 7
          %s1453 = scalar_select %p1452, %s1451, 7
          %s1454 = smul.addr %s1453, 8
          %s1455 = scalar_lea.vmem %s9, %s1454
        $region76: #{keypoint_mlp_forward.1} parent=71 // pred_fallthru
          _
      $region72: #{keypoint_mlp_forward.1} parent=5 // pred_fallthru
        _
    $region6: #{keypoint_mlp_forward.1} parent=1 // loop_footer
      %s21 = sadd.s32 1, %s17
    $region7: #{keypoint_mlp_forward.1} parent=1 // loop_footer_branch
      %16 = sbr.rel target = $region3
    $region8: #{keypoint_mlp_forward.1} parent=1 // loop_exit
      _
    %1456 = vsyncpa [#allocation3], 1
    %s1457 = scalar_lea.sflag [#allocation3], 1
    %1458 = vsyncpa %s1457, 1
    %1459 = vsyncpa [#allocation5], 1

</llo_original>
